<compile_context>
chip_gen: v7x
topology: tpu7x:2x2x1
jax: 0.10.0
libtpu: 0.0.40
codegen_flags: <defaults>
</compile_context>

<pallas_src>
import functools

import jax
import jax.numpy as jnp
from jax import lax
from jax.experimental import pallas as pl
from jax.experimental.pallas import tpu as pltpu


def _round_up(x, m):
    return ((x + m - 1) // m) * m


def _mlp_kernel(n_linear, approx_gelu, x_ref, *refs):
    """x_ref: (block_b, d_in) native batch-major input tile.
    refs = (w0, b0, w1, b1, ..., w_{L-1}, b_{L-1}, o_ref).
      w_i: (out_i, in_i)  (PyTorch Linear layout)
      b_i: (out_i, 1)     (broadcast over the lane/batch axis)
      o_ref: (block_b, d_out)

    torch's  x @ W.T + b  is computed as  W @ x_T + b  with the batch on the
    lane axis for every hidden layer.
    """
    o_ref = refs[-1]
    params = refs[:-1]

    x = x_ref[...]
    if x.dtype != jnp.float32:
        x = x.astype(jnp.float32)

    # Layer 0: contract W0's input dim against x's feature dim (NT matmul) so
    # the result comes out already transposed as (out0, block_b) -- no
    # wrapper-side input transpose needed.
    w0 = params[0][...]
    b0 = params[1][...]
    h = lax.dot_general(w0, x, (((1,), (1,)), ((), ())),
                        preferred_element_type=jnp.float32) + b0

    if n_linear == 1:  # degenerate: single Linear, no activation
        o_ref[...] = h.T.astype(o_ref.dtype)
        return

    # tanh GELU -> EUP (separate VLIW slot); erf form kept for exact torch parity.
    h = jax.nn.gelu(h, approximate=approx_gelu)

    for li in range(1, n_linear - 1):
        w = params[2 * li][...]
        b = params[2 * li + 1][...]
        h = jnp.dot(w, h, preferred_element_type=jnp.float32) + b
        h = jax.nn.gelu(h, approximate=approx_gelu)

    # Last linear (lane-dense MXU), then a small in-kernel transpose so the
    # output is stored natively as (block_b, d_out) -- no separate XLA
    # transpose pass over the whole output in HBM.
    w = params[-2][...]
    b = params[-1][...]
    out_t = jnp.dot(w, h, preferred_element_type=jnp.float32) + b  # (d_out, block_b)
    o_ref[...] = out_t.T.astype(o_ref.dtype)


def _pick_block_b(batch, cap=2048):
    """Large lane-aligned (multiple-of-128) batch tile.

    Big tiles amortize the ~0.35 us per-grid-step overhead on single-TC chips
    (v5e/v6e, grid is a serial loop).  When the whole batch fits under the cap
    it is still split into two tiles so v7x's two TensorCores both get work
    (the extra step is negligible on 1-TC chips)."""
    b128 = _round_up(batch, 128)
    if b128 <= 128:
        return 128
    if b128 <= cap:
        return _round_up((b128 + 1) // 2, 128)
    return cap


def deep_model_single_forward(x, weights, biases, *, block_b=None,
                              approx_gelu=True):
    """x: (B, d_in); weights[i]: (planes[i+1], planes[i]) (PyTorch layout);
    biases[i]: (planes[i+1], 1).  Returns (B, d_out).

    approx_gelu=True (default) uses tanh GELU (~1e-3 activation delta vs
    torch.nn.GELU()); pass False for exact-erf parity."""
    B, d_in = x.shape
    n_linear = len(weights)
    d_out = weights[-1].shape[0]

    if block_b is None:
        block_b = _pick_block_b(B)
    assert block_b % 128 == 0, "batch tile must be lane-aligned"

    # Pad the batch to a multiple of the tile (padded rows compute garbage and
    # are sliced off) -- keeps the tile / VMEM footprint bounded for any B.
    B_pad = _round_up(B, block_b)
    if B_pad != B:
        x = jnp.pad(x, ((0, B_pad - B), (0, 0)))

    in_specs = [pl.BlockSpec((block_b, d_in), lambda i: (i, 0))]
    flat_params = []
    for w, b in zip(weights, biases):
        # Constant-index params: whole tensor resident in VMEM (tiny).
        in_specs.append(pl.BlockSpec(w.shape, lambda i: (0, 0)))
        in_specs.append(pl.BlockSpec(b.shape, lambda i: (0, 0)))
        flat_params += [w, b]

    out_specs = pl.BlockSpec((block_b, d_out), lambda i: (i, 0))

    # Explicit VMEM budget, accounting for (8,128) tile padding; headroom x2,
    # clamped so it also fits v7x's 64 MiB physical VMEM.
    def _padded_bytes(shape, itemsize=4):
        r = _round_up(shape[0], 8) if len(shape) > 1 else 1
        c = _round_up(shape[-1], 128)
        return r * c * itemsize

    tile_bytes = 2 * (_padded_bytes((block_b, d_in)) +
                      _padded_bytes((block_b, d_out)))
    param_bytes = 2 * sum(_padded_bytes(p.shape) for p in flat_params)
    widest = max(w.shape[0] for w in weights)
    act_bytes = 4 * _round_up(widest, 8) * block_b * 4
    needed = tile_bytes + param_bytes + act_bytes
    vmem_limit = int(min(max(2 * needed, 8 << 20), 32 << 20))

    kernel = functools.partial(_mlp_kernel, n_linear, approx_gelu)
    out = pl.pallas_call(
        kernel,
        out_shape=jax.ShapeDtypeStruct((B_pad, d_out), x.dtype),
        grid=(B_pad // block_b,),
        in_specs=in_specs,
        out_specs=out_specs,
        compiler_params=pltpu.CompilerParams(
            dimension_semantics=("parallel",),
            vmem_limit_bytes=vmem_limit),
    )(x, *flat_params)
    return out[:B] if B_pad != B else out


def init_params(planes, key):
    """Deterministic xavier_uniform_ (gain=1) weights in PyTorch (out, in)
    layout and zero biases, matching initialize_weights() in the module."""
    weights, biases = [], []
    for i in range(len(planes) - 1):
        key, sub = jax.random.split(key)
        fan_in, fan_out = planes[i], planes[i + 1]
        bound = (6.0 / (fan_in + fan_out)) ** 0.5
        w = jax.random.uniform(sub, (fan_out, fan_in), jnp.float32,
                               minval=-bound, maxval=bound)
        b = jnp.zeros((fan_out, 1), jnp.float32)
        weights.append(w)
        biases.append(b)
    return weights, biases


if __name__ == "__main__":
    # Typical PINN head: (x, y) coordinates -> (u, v, p).
    planes = [2, 32, 32, 3]
    B = 200  # deliberately NOT a multiple of 128: exercises the padding path

    key = jax.random.PRNGKey(0)
    kx, kp = jax.random.split(key)
    x = jax.random.normal(kx, (B, planes[0]), jnp.float32)
    weights, biases = init_params(planes, kp)

    out = deep_model_single_forward(x, weights, biases)
    out = jax.block_until_ready(out)
    assert out.shape == (B, planes[-1])

    # Pure-JAX reference of the same forward pass (torch layout: y = x W^T + b),
    # using the same (tanh) GELU as the kernel and high-precision matmuls.
    h = x
    for i, (w, b) in enumerate(zip(weights, biases)):
        h = jnp.dot(h, w.T, precision=jax.lax.Precision.HIGHEST) + b.reshape(1, -1)
        if i < len(weights) - 1:
            h = jax.nn.gelu(h, approximate=True)

    assert jnp.allclose(out, h, atol=1e-3, rtol=1e-3), "mismatch vs reference"
    print("KERNEL_OK")

    # TODO(synk): loadmodel() (torch checkpoint I/O) and equation() (returns 0)
    # have no kernel-side equivalent and are intentionally not translated.
</pallas_src>

<mosaic_0001>
module attributes {stable_mosaic.version = 11 : i64} {
  func.func @_mlp_kernel(%arg0: i32, %arg1: memref<128x2xf32, #tpu.memory_space<vmem>>, %arg2: memref<32x2xf32, #tpu.memory_space<vmem>>, %arg3: memref<32x1xf32, #tpu.memory_space<vmem>>, %arg4: memref<32x32xf32, #tpu.memory_space<vmem>>, %arg5: memref<32x1xf32, #tpu.memory_space<vmem>>, %arg6: memref<3x32xf32, #tpu.memory_space<vmem>>, %arg7: memref<3x1xf32, #tpu.memory_space<vmem>>, %arg8: memref<128x3xf32, #tpu.memory_space<vmem>>) attributes {dimension_semantics = [#tpu.dimension_semantics<parallel>], iteration_bounds = array<i64: 2>, scalar_prefetch = 0 : i64, scratch_operands = 0 : i64, tpu.core_type = #tpu.core_type<tc>, window_params = [{transform_indices = @transform_0, window_bounds = array<i64: 128, 2>}, {pipeline_mode = #tpu.pipeline_mode<synchronous>, transform_indices = @transform_1, window_bounds = array<i64: 32, 2>}, {pipeline_mode = #tpu.pipeline_mode<synchronous>, transform_indices = @transform_2, window_bounds = array<i64: 32, 1>}, {pipeline_mode = #tpu.pipeline_mode<synchronous>, transform_indices = @transform_3, window_bounds = array<i64: 32, 32>}, {pipeline_mode = #tpu.pipeline_mode<synchronous>, transform_indices = @transform_4, window_bounds = array<i64: 32, 1>}, {pipeline_mode = #tpu.pipeline_mode<synchronous>, transform_indices = @transform_5, window_bounds = array<i64: 3, 32>}, {pipeline_mode = #tpu.pipeline_mode<synchronous>, transform_indices = @transform_6, window_bounds = array<i64: 3, 1>}, {transform_indices = @transform_7, window_bounds = array<i64: 128, 3>}]} {
    %c0 = arith.constant 0 : index
    %c0_0 = arith.constant 0 : index
    %0 = vector.load %arg1[%c0, %c0_0] : memref<128x2xf32, #tpu.memory_space<vmem>>, vector<128x2xf32>
    %c0_1 = arith.constant 0 : index
    %c0_2 = arith.constant 0 : index
    %1 = vector.load %arg2[%c0_1, %c0_2] : memref<32x2xf32, #tpu.memory_space<vmem>>, vector<32x2xf32>
    %c0_3 = arith.constant 0 : index
    %c0_4 = arith.constant 0 : index
    %2 = vector.load %arg3[%c0_3, %c0_4] : memref<32x1xf32, #tpu.memory_space<vmem>>, vector<32x1xf32>
    %cst = arith.constant dense<0.000000e+00> : vector<32x128xf32>
    %3 = tpu.matmul %1, %0, %cst {dimension_numbers = #tpu.dot_dimension_numbers<[1], [1], [0], [0], [0, 0, 1, 0], [], []>} : vector<32x2xf32>, vector<128x2xf32>, vector<32x128xf32> -> vector<32x128xf32>
    %4 = vector.broadcast %2 : vector<32x1xf32> to vector<32x128xf32>
    %5 = arith.addf %3, %4 : vector<32x128xf32>
    %6 = arith.mulf %5, %5 : vector<32x128xf32>
    %7 = arith.mulf %5, %6 : vector<32x128xf32>
    %cst_5 = arith.constant 4.471500e-02 : f32
    %8 = vector.broadcast %cst_5 : f32 to vector<32x128xf32>
    %9 = arith.mulf %8, %7 : vector<32x128xf32>
    %10 = arith.addf %5, %9 : vector<32x128xf32>
    %cst_6 = arith.constant 0.797884583 : f32
    %11 = vector.broadcast %cst_6 : f32 to vector<32x128xf32>
    %12 = arith.mulf %11, %10 : vector<32x128xf32>
    %13 = math.tanh %12 : vector<32x128xf32>
    %cst_7 = arith.constant 1.000000e+00 : f32
    %14 = vector.broadcast %cst_7 : f32 to vector<32x128xf32>
    %15 = arith.addf %14, %13 : vector<32x128xf32>
    %cst_8 = arith.constant 5.000000e-01 : f32
    %16 = vector.broadcast %cst_8 : f32 to vector<32x128xf32>
    %17 = arith.mulf %16, %15 : vector<32x128xf32>
    %18 = arith.mulf %5, %17 : vector<32x128xf32>
    %c0_9 = arith.constant 0 : index
    %c0_10 = arith.constant 0 : index
    %19 = vector.load %arg4[%c0_9, %c0_10] : memref<32x32xf32, #tpu.memory_space<vmem>>, vector<32x32xf32>
    %c0_11 = arith.constant 0 : index
    %c0_12 = arith.constant 0 : index
    %20 = vector.load %arg5[%c0_11, %c0_12] : memref<32x1xf32, #tpu.memory_space<vmem>>, vector<32x1xf32>
    %cst_13 = arith.constant dense<0.000000e+00> : vector<32x128xf32>
    %21 = tpu.matmul %19, %18, %cst_13 {dimension_numbers = #tpu.dot_dimension_numbers<[1], [0], [0], [1], [0, 0, 1, 1], [], []>} : vector<32x32xf32>, vector<32x128xf32>, vector<32x128xf32> -> vector<32x128xf32>
    %22 = vector.broadcast %20 : vector<32x1xf32> to vector<32x128xf32>
    %23 = arith.addf %21, %22 : vector<32x128xf32>
    %24 = arith.mulf %23, %23 : vector<32x128xf32>
    %25 = arith.mulf %23, %24 : vector<32x128xf32>
    %cst_14 = arith.constant 4.471500e-02 : f32
    %26 = vector.broadcast %cst_14 : f32 to vector<32x128xf32>
    %27 = arith.mulf %26, %25 : vector<32x128xf32>
    %28 = arith.addf %23, %27 : vector<32x128xf32>
    %cst_15 = arith.constant 0.797884583 : f32
    %29 = vector.broadcast %cst_15 : f32 to vector<32x128xf32>
    %30 = arith.mulf %29, %28 : vector<32x128xf32>
    %31 = math.tanh %30 : vector<32x128xf32>
    %cst_16 = arith.constant 1.000000e+00 : f32
    %32 = vector.broadcast %cst_16 : f32 to vector<32x128xf32>
    %33 = arith.addf %32, %31 : vector<32x128xf32>
    %cst_17 = arith.constant 5.000000e-01 : f32
    %34 = vector.broadcast %cst_17 : f32 to vector<32x128xf32>
    %35 = arith.mulf %34, %33 : vector<32x128xf32>
    %36 = arith.mulf %23, %35 : vector<32x128xf32>
    %c0_18 = arith.constant 0 : index
    %c0_19 = arith.constant 0 : index
    %37 = vector.load %arg6[%c0_18, %c0_19] : memref<3x32xf32, #tpu.memory_space<vmem>>, vector<3x32xf32>
    %c0_20 = arith.constant 0 : index
    %c0_21 = arith.constant 0 : index
    %38 = vector.load %arg7[%c0_20, %c0_21] : memref<3x1xf32, #tpu.memory_space<vmem>>, vector<3x1xf32>
    %cst_22 = arith.constant dense<0.000000e+00> : vector<3x128xf32>
    %39 = tpu.matmul %37, %36, %cst_22 {dimension_numbers = #tpu.dot_dimension_numbers<[1], [0], [0], [1], [0, 0, 1, 1], [], []>} : vector<3x32xf32>, vector<32x128xf32>, vector<3x128xf32> -> vector<3x128xf32>
    %40 = vector.broadcast %38 : vector<3x1xf32> to vector<3x128xf32>
    %41 = arith.addf %39, %40 : vector<3x128xf32>
    %42 = tpu.transpose %41, [1, 0] : vector<3x128xf32> -> vector<128x3xf32>
    %c0_23 = arith.constant 0 : index
    %c0_24 = arith.constant 0 : index
    %43 = vector.load %arg8[%c0_23, %c0_24] : memref<128x3xf32, #tpu.memory_space<vmem>>, vector<128x3xf32>
    tpu.vector_store %arg8[%c0_23, %c0_24], %42 {strides = array<i32>} : memref<128x3xf32, #tpu.memory_space<vmem>>, vector<128x3xf32>,
    return
  }
  func.func @transform_0(%arg0: i32) -> (i32, i32) {
    %c0_i32 = arith.constant 0 : i32
    %c0_i32_0 = arith.constant 0 : i32
    return %arg0, %c0_i32 : i32, i32
  }
  func.func @transform_1(%arg0: i32) -> (i32, i32) {
    %c0_i32 = arith.constant 0 : i32
    %c0_i32_0 = arith.constant 0 : i32
    %c0_i32_1 = arith.constant 0 : i32
    return %c0_i32, %c0_i32_0 : i32, i32
  }
  func.func @transform_2(%arg0: i32) -> (i32, i32) {
    %c0_i32 = arith.constant 0 : i32
    %c0_i32_0 = arith.constant 0 : i32
    %c0_i32_1 = arith.constant 0 : i32
    return %c0_i32, %c0_i32_0 : i32, i32
  }
  func.func @transform_3(%arg0: i32) -> (i32, i32) {
    %c0_i32 = arith.constant 0 : i32
    %c0_i32_0 = arith.constant 0 : i32
    %c0_i32_1 = arith.constant 0 : i32
    return %c0_i32, %c0_i32_0 : i32, i32
  }
  func.func @transform_4(%arg0: i32) -> (i32, i32) {
    %c0_i32 = arith.constant 0 : i32
    %c0_i32_0 = arith.constant 0 : i32
    %c0_i32_1 = arith.constant 0 : i32
    return %c0_i32, %c0_i32_0 : i32, i32
  }
  func.func @transform_5(%arg0: i32) -> (i32, i32) {
    %c0_i32 = arith.constant 0 : i32
    %c0_i32_0 = arith.constant 0 : i32
    %c0_i32_1 = arith.constant 0 : i32
    return %c0_i32, %c0_i32_0 : i32, i32
  }
  func.func @transform_6(%arg0: i32) -> (i32, i32) {
    %c0_i32 = arith.constant 0 : i32
    %c0_i32_0 = arith.constant 0 : i32
    %c0_i32_1 = arith.constant 0 : i32
    return %c0_i32, %c0_i32_0 : i32, i32
  }
  func.func @transform_7(%arg0: i32) -> (i32, i32) {
    %c0_i32 = arith.constant 0 : i32
    %c0_i32_0 = arith.constant 0 : i32
    return %arg0, %c0_i32 : i32, i32
  }
}

</mosaic_0001>

<llo_original>
// kernel: tpu_custom_call.1
$region0: #{tpu_custom_call.1}
  #allocation0 [shape = 'u32[]', space=smem, size = 0x4, offset = 0x4, fixed_abs, tag = 'smem constant byte address 0x4 - core index']
  #allocation1 [shape = 'u32[144,128]{1,0:T(1,128)}', space=vmem, size = 0x12000, scoped, tag = 'internal scratch']
  %s0 = inlined_call_operand.vmem [shape: f32[256,2], index: 0, kind: input, shape index: {}]
  %s1 = inlined_call_operand.vmem [shape: f32[32,2], index: 1, kind: input, shape index: {}]
  %s2 = inlined_call_operand.vmem [shape: f32[32,1], index: 2, kind: input, shape index: {}]
  %s3 = inlined_call_operand.vmem [shape: f32[32,32], index: 3, kind: input, shape index: {}]
  %s4 = inlined_call_operand.vmem [shape: f32[32,1], index: 4, kind: input, shape index: {}]
  %s5 = inlined_call_operand.vmem [shape: f32[3,32], index: 5, kind: input, shape index: {}]
  %s6 = inlined_call_operand.vmem [shape: f32[3,1], index: 6, kind: input, shape index: {}]
  %s7 = inlined_call_operand.vmem [shape: f32[256,3], index: 7, kind: output, shape index: {}]
  %s8 = sld [smem:[#allocation0]]
  $region61: #{tpu_custom_call.1} parent=0
    _
  %s10 = ssub.s32 1, %s8
  %s11 = scalar_select 0, %s10, %s8
  loop: start=0, step=1, limit=4
  $region2: #{tpu_custom_call.1} parent=0 // loop_pre_header
    _
  $region3: #{tpu_custom_call.1} parent=0 // loop_header
    %s13 = sphi 0, %s17
    %p14 = scmp.ge.s32.totalorder %s13, 4
    %s23 = sphi 0, %s25
    %s26 = sphi 0, %s23
    %s27 = sphi 0, %s26
    %s43 = sphi 0, %s27
    %s47 = sphi 0, %s47
    %s49 = sphi 0, %s47
    %s50 = sphi 0, %s49
    %s64 = sphi 0, %s50
    %s68 = sphi 0, %s68
    %s70 = sphi 0, %s68
    %s71 = sphi 0, %s70
    %s85 = sphi 0, %s71
    %s89 = sphi 0, %s89
    %s91 = sphi 0, %s89
    %s92 = sphi 0, %s91
    %s106 = sphi 0, %s92
    %s110 = sphi 0, %s110
    %s112 = sphi 0, %s110
    %s113 = sphi 0, %s112
    %s127 = sphi 0, %s113
    %s131 = sphi 0, %s131
    %s133 = sphi 0, %s131
    %s134 = sphi 0, %s133
    %s148 = sphi 0, %s134
    %s152 = sphi 0, %s152
    %s154 = sphi 0, %s152
    %s155 = sphi 0, %s154
    %s169 = sphi 0, %s155
    %s175 = sphi 0, %s177
    %s178 = sphi 0, %s175
    %s179 = sphi 0, %s178
    %s195 = sphi 0, %s179
  $region4: #{tpu_custom_call.1} parent=0 // loop_header_branch
    %16 = sbr.rel (%p14) target = $region8
  $region5: #{tpu_custom_call.1} parent=0 // loop_body
    %s18 = ssub.s32 %s13, 1
    %s19 = ssub.s32 %s13, 2
    %s20 = sadd.s32 %s13, 1
    %s21 = ssub.s32 %s13, %s20
    %p22 = scmp.eq.s32.totalorder %s21, 0
    %s24 = sadd.s32 %s23, 1
    %s25 = scalar_select %p22, %s23, %s24
    %p28 = pneg %p22
    %p29 = scmp.eq.s32.totalorder %s13, 1
    %p30 = por %p28, %p29
    %p31 = scmp.ne.s32.totalorder %s23, %s26
    %p32 = scmp.eq.s32.totalorder %s13, 0
    %p33 = por %p31, %p32
    %p34 = scmp.ne.s32.totalorder %s23, %s26
    %p35 = scmp.eq.s32.totalorder %s18, 1
    %p36 = por %p34, %p35
    %p37 = scmp.ne.s32.totalorder %s26, %s27
    %p38 = scmp.eq.s32.totalorder %s18, 0
    %p39 = por %p37, %p38
    %p40 = scmp.ne.s32.totalorder %s26, %s27
    %p41 = scmp.eq.s32.totalorder %s19, 1
    %p42 = por %p40, %p41
    %p44 = scmp.ne.s32.totalorder %s27, %s43
    %p45 = scmp.eq.s32.totalorder %s19, 0
    %p46 = por %p44, %p45
    %s48 = sadd.s32 %s47, 1
    %p51 = scmp.eq.s32.totalorder %s13, 1
    %p52 = scmp.ne.s32.totalorder %s47, %s49
    %p53 = scmp.eq.s32.totalorder %s13, 0
    %p54 = por %p52, %p53
    %p55 = scmp.ne.s32.totalorder %s47, %s49
    %p56 = scmp.eq.s32.totalorder %s18, 1
    %p57 = por %p55, %p56
    %p58 = scmp.ne.s32.totalorder %s49, %s50
    %p59 = scmp.eq.s32.totalorder %s18, 0
    %p60 = por %p58, %p59
    %p61 = scmp.ne.s32.totalorder %s49, %s50
    %p62 = scmp.eq.s32.totalorder %s19, 1
    %p63 = por %p61, %p62
    %p65 = scmp.ne.s32.totalorder %s50, %s64
    %p66 = scmp.eq.s32.totalorder %s19, 0
    %p67 = por %p65, %p66
    %s69 = sadd.s32 %s68, 1
    %p72 = scmp.eq.s32.totalorder %s13, 1
    %p73 = scmp.ne.s32.totalorder %s68, %s70
    %p74 = scmp.eq.s32.totalorder %s13, 0
    %p75 = por %p73, %p74
    %p76 = scmp.ne.s32.totalorder %s68, %s70
    %p77 = scmp.eq.s32.totalorder %s18, 1
    %p78 = por %p76, %p77
    %p79 = scmp.ne.s32.totalorder %s70, %s71
    %p80 = scmp.eq.s32.totalorder %s18, 0
    %p81 = por %p79, %p80
    %p82 = scmp.ne.s32.totalorder %s70, %s71
    %p83 = scmp.eq.s32.totalorder %s19, 1
    %p84 = por %p82, %p83
    %p86 = scmp.ne.s32.totalorder %s71, %s85
    %p87 = scmp.eq.s32.totalorder %s19, 0
    %p88 = por %p86, %p87
    %s90 = sadd.s32 %s89, 1
    %p93 = scmp.eq.s32.totalorder %s13, 1
    %p94 = scmp.ne.s32.totalorder %s89, %s91
    %p95 = scmp.eq.s32.totalorder %s13, 0
    %p96 = por %p94, %p95
    %p97 = scmp.ne.s32.totalorder %s89, %s91
    %p98 = scmp.eq.s32.totalorder %s18, 1
    %p99 = por %p97, %p98
    %p100 = scmp.ne.s32.totalorder %s91, %s92
    %p101 = scmp.eq.s32.totalorder %s18, 0
    %p102 = por %p100, %p101
    %p103 = scmp.ne.s32.totalorder %s91, %s92
    %p104 = scmp.eq.s32.totalorder %s19, 1
    %p105 = por %p103, %p104
    %p107 = scmp.ne.s32.totalorder %s92, %s106
    %p108 = scmp.eq.s32.totalorder %s19, 0
    %p109 = por %p107, %p108
    %s111 = sadd.s32 %s110, 1
    %p114 = scmp.eq.s32.totalorder %s13, 1
    %p115 = scmp.ne.s32.totalorder %s110, %s112
    %p116 = scmp.eq.s32.totalorder %s13, 0
    %p117 = por %p115, %p116
    %p118 = scmp.ne.s32.totalorder %s110, %s112
    %p119 = scmp.eq.s32.totalorder %s18, 1
    %p120 = por %p118, %p119
    %p121 = scmp.ne.s32.totalorder %s112, %s113
    %p122 = scmp.eq.s32.totalorder %s18, 0
    %p123 = por %p121, %p122
    %p124 = scmp.ne.s32.totalorder %s112, %s113
    %p125 = scmp.eq.s32.totalorder %s19, 1
    %p126 = por %p124, %p125
    %p128 = scmp.ne.s32.totalorder %s113, %s127
    %p129 = scmp.eq.s32.totalorder %s19, 0
    %p130 = por %p128, %p129
    %s132 = sadd.s32 %s131, 1
    %p135 = scmp.eq.s32.totalorder %s13, 1
    %p136 = scmp.ne.s32.totalorder %s131, %s133
    %p137 = scmp.eq.s32.totalorder %s13, 0
    %p138 = por %p136, %p137
    %p139 = scmp.ne.s32.totalorder %s131, %s133
    %p140 = scmp.eq.s32.totalorder %s18, 1
    %p141 = por %p139, %p140
    %p142 = scmp.ne.s32.totalorder %s133, %s134
    %p143 = scmp.eq.s32.totalorder %s18, 0
    %p144 = por %p142, %p143
    %p145 = scmp.ne.s32.totalorder %s133, %s134
    %p146 = scmp.eq.s32.totalorder %s19, 1
    %p147 = por %p145, %p146
    %p149 = scmp.ne.s32.totalorder %s134, %s148
    %p150 = scmp.eq.s32.totalorder %s19, 0
    %p151 = por %p149, %p150
    %s153 = sadd.s32 %s152, 1
    %p156 = scmp.eq.s32.totalorder %s13, 1
    %p157 = scmp.ne.s32.totalorder %s152, %s154
    %p158 = scmp.eq.s32.totalorder %s13, 0
    %p159 = por %p157, %p158
    %p160 = scmp.ne.s32.totalorder %s152, %s154
    %p161 = scmp.eq.s32.totalorder %s18, 1
    %p162 = por %p160, %p161
    %p163 = scmp.ne.s32.totalorder %s154, %s155
    %p164 = scmp.eq.s32.totalorder %s18, 0
    %p165 = por %p163, %p164
    %p166 = scmp.ne.s32.totalorder %s154, %s155
    %p167 = scmp.eq.s32.totalorder %s19, 1
    %p168 = por %p166, %p167
    %p170 = scmp.ne.s32.totalorder %s155, %s169
    %p171 = scmp.eq.s32.totalorder %s19, 0
    %p172 = por %p170, %p171
    %s173 = ssub.s32 %s13, %s20
    %p174 = scmp.eq.s32.totalorder %s173, 0
    %s176 = sadd.s32 %s175, 1
    %s177 = scalar_select %p174, %s175, %s176
    %p180 = pneg %p174
    %p181 = scmp.eq.s32.totalorder %s13, 1
    %p182 = por %p180, %p181
    %p183 = scmp.ne.s32.totalorder %s175, %s178
    %p184 = scmp.eq.s32.totalorder %s13, 0
    %p185 = por %p183, %p184
    %p186 = scmp.ne.s32.totalorder %s175, %s178
    %p187 = scmp.eq.s32.totalorder %s18, 1
    %p188 = por %p186, %p187
    %p189 = scmp.ne.s32.totalorder %s178, %s179
    %p190 = scmp.eq.s32.totalorder %s18, 0
    %p191 = por %p189, %p190
    %p192 = scmp.ne.s32.totalorder %s178, %s179
    %p193 = scmp.eq.s32.totalorder %s19, 1
    %p194 = por %p192, %p193
    %p196 = scmp.ne.s32.totalorder %s179, %s195
    %p197 = scmp.eq.s32.totalorder %s19, 0
    %p198 = por %p196, %p197
    %p199 = scmp.le.s32.totalorder 1, %s13
    %p200 = scmp.lt.s32.totalorder %s13, 3
    %p201 = pnand %p199, %p200
    %p202 = pneg %p201
    // Predicated region
    $region9: #{tpu_custom_call.1} parent=5 // pred_check
      _
    $region10: #{tpu_custom_call.1} parent=5 // pred_check_branch
      %204 = sbr.rel (%p201) target = $region12
    $region11: #{tpu_custom_call.1} parent=5 // pred_region
      %s205 = ssub.s32 %s13, 1
      // Predicated region
      $region13: #{tpu_custom_call.1} parent=11 // pred_check
        %p206 = pneg %p60
      $region14: #{tpu_custom_call.1} parent=11 // pred_check_branch
        %208 = sbr.rel (%p206) target = $region16
      $region15: #{tpu_custom_call.1} parent=11 // pred_region
        _
      $region16: #{tpu_custom_call.1} parent=11 // pred_fallthru
        _
      // Predicated region
      $region17: #{tpu_custom_call.1} parent=11 // pred_check
        %p209 = pneg %p81
      $region18: #{tpu_custom_call.1} parent=11 // pred_check_branch
        %211 = sbr.rel (%p209) target = $region20
      $region19: #{tpu_custom_call.1} parent=11 // pred_region
        _
      $region20: #{tpu_custom_call.1} parent=11 // pred_fallthru
        _
      // Predicated region
      $region21: #{tpu_custom_call.1} parent=11 // pred_check
        %p212 = pneg %p102
      $region22: #{tpu_custom_call.1} parent=11 // pred_check_branch
        %214 = sbr.rel (%p212) target = $region24
      $region23: #{tpu_custom_call.1} parent=11 // pred_region
        _
      $region24: #{tpu_custom_call.1} parent=11 // pred_fallthru
        _
      // Predicated region
      $region25: #{tpu_custom_call.1} parent=11 // pred_check
        %p215 = pneg %p123
      $region26: #{tpu_custom_call.1} parent=11 // pred_check_branch
        %217 = sbr.rel (%p215) target = $region28
      $region27: #{tpu_custom_call.1} parent=11 // pred_region
        _
      $region28: #{tpu_custom_call.1} parent=11 // pred_fallthru
        _
      // Predicated region
      $region29: #{tpu_custom_call.1} parent=11 // pred_check
        %p218 = pneg %p144
      $region30: #{tpu_custom_call.1} parent=11 // pred_check_branch
        %220 = sbr.rel (%p218) target = $region32
      $region31: #{tpu_custom_call.1} parent=11 // pred_region
        _
      $region32: #{tpu_custom_call.1} parent=11 // pred_fallthru
        _
      // Predicated region
      $region33: #{tpu_custom_call.1} parent=11 // pred_check
        %p221 = pneg %p165
      $region34: #{tpu_custom_call.1} parent=11 // pred_check_branch
        %223 = sbr.rel (%p221) target = $region36
      $region35: #{tpu_custom_call.1} parent=11 // pred_region
        _
      $region36: #{tpu_custom_call.1} parent=11 // pred_fallthru
        _
    $region12: #{tpu_custom_call.1} parent=5 // pred_fallthru
      _
    %p224 = scmp.lt.s32.totalorder %s13, 2
    // Predicated region
    $region37: #{tpu_custom_call.1} parent=5 // pred_check
      %p225 = pneg %p224
    $region38: #{tpu_custom_call.1} parent=5 // pred_check_branch
      %227 = sbr.rel (%p225) target = $region40
    $region39: #{tpu_custom_call.1} parent=5 // pred_region
      // Predicated region
      $region41: #{tpu_custom_call.1} parent=39 // pred_check
        %p228 = pneg %p33
      $region42: #{tpu_custom_call.1} parent=39 // pred_check_branch
        %230 = sbr.rel (%p228) target = $region44
      $region43: #{tpu_custom_call.1} parent=39 // pred_region
        %s231 = smul.u32 16, %s13
        %p232 = scmp.lt.s32.totalorder %s231, 31
        %s233 = scalar_select %p232, %s231, 31
        %s234 = smul.addr %s233, 8
        %s235 = scalar_lea.vmem %s0, %s234
        %s236 = smul.u32 16, %s13
      $region44: #{tpu_custom_call.1} parent=39 // pred_fallthru
        _
    $region40: #{tpu_custom_call.1} parent=5 // pred_fallthru
      _
    %p237 = scmp.le.s32.totalorder 1, %s13
    %p238 = scmp.lt.s32.totalorder %s13, 3
    %p239 = pnand %p237, %p238
    %p240 = pneg %p239
    // Predicated region
    $region45: #{tpu_custom_call.1} parent=5 // pred_check
      _
    $region46: #{tpu_custom_call.1} parent=5 // pred_check_branch
      %242 = sbr.rel (%p239) target = $region48
    $region47: #{tpu_custom_call.1} parent=5 // pred_region
      %s243 = ssub.s32 %s13, 1
      %s244 = smul.u32 16, %s18
      %p245 = scmp.lt.s32.totalorder %s244, 31
      %s246 = scalar_select %p245, %s244, 31
      %s247 = smul.addr %s246, 8
      %s248 = scalar_lea.vmem %s0, %s247
      %p249 = pneg %p39
      %p250 = pneg %p36
      %p251 = pneg %p60
      %p252 = pneg %p57
      %p253 = pneg %p81
      %p254 = pneg %p78
      %p255 = pneg %p102
      %p256 = pneg %p99
      %p257 = pneg %p123
      %p258 = pneg %p120
      %p259 = pneg %p144
      %p260 = pneg %p141
      %p261 = pneg %p165
      %p262 = pneg %p162
      %p263 = pneg %p191
      %p264 = pneg %p188
      %s265 = smul.u32 16, %s18
      %p266 = scmp.lt.s32.totalorder %s265, 31
      %s267 = scalar_select %p266, %s265, 31
      %s268 = smul.addr %s267, 8
      %s269 = scalar_lea.vmem %s7, %s268
      %s270 = smul.u32 16, %s18
      %p271 = scmp.lt.s32.totalorder %s270, 31
      %s272 = scalar_select %p271, %s270, 31
      %s273 = smul.addr %s272, 8
      %s274 = scalar_lea.vmem %s0, %s273
      %s275 = smul.u32 16, %s18
      %s276 = smul.u32 16, %s18
      %p277 = scmp.lt.s32.totalorder %s276, 31
      %s278 = scalar_select %p277, %s276, 31
      %s279 = smul.addr %s278, 8
      %s280 = scalar_lea.vmem %s7, %s279
      %s281 = smul.u32 16, %s18
      %v282 = vld [vmem:[%s274] sm:$0xff]
      %v283 = vld [vmem:[%s274 + $0x8] sm:$0xff]
      %v284 = vld [vmem:[%s274 + $0x10] sm:$0xff]
      %v285 = vld [vmem:[%s274 + $0x18] sm:$0xff]
      %v286 = vld [vmem:[%s274 + $0x20] sm:$0xff]
      %v287 = vld [vmem:[%s274 + $0x28] sm:$0xff]
      %v288 = vld [vmem:[%s274 + $0x30] sm:$0xff]
      %v289 = vld [vmem:[%s274 + $0x38] sm:$0xff]
      %v290 = vld [vmem:[%s274 + $0x40] sm:$0xff]
      %v291 = vld [vmem:[%s274 + $0x48] sm:$0xff]
      %v292 = vld [vmem:[%s274 + $0x50] sm:$0xff]
      %v293 = vld [vmem:[%s274 + $0x58] sm:$0xff]
      %v294 = vld [vmem:[%s274 + $0x60] sm:$0xff]
      %v295 = vld [vmem:[%s274 + $0x68] sm:$0xff]
      %v296 = vld [vmem:[%s274 + $0x70] sm:$0xff]
      %v297 = vld [vmem:[%s274 + $0x78] sm:$0xff]
      %v298 = vld [vmem:[%s1] sm:$0xff]
      %v299 = vld [vmem:[%s1 + $0x8] sm:$0xff]
      %v300 = vld [vmem:[%s1 + $0x10] sm:$0xff]
      %v301 = vld [vmem:[%s1 + $0x18] sm:$0xff]
      %v302 = vld [vmem:[%s2] sm:$0xff]
      %v303 = vld [vmem:[%s2 + $0x8] sm:$0xff]
      %v304 = vld [vmem:[%s2 + $0x10] sm:$0xff]
      %v305 = vld [vmem:[%s2 + $0x18] sm:$0xff]
      %307 = vset.pattern.permute.xlu0 0
      %308 = vperm.xlu0 %307, %v302
      %v309 = vpop.permute.xlu0 %308
      %312 = vset.pattern.permute.xlu0 0
      %313 = vperm.xlu0 %312, %v303
      %v314 = vpop.permute.xlu0 %313
      %317 = vset.pattern.permute.xlu0 0
      %318 = vperm.xlu0 %317, %v304
      %v319 = vpop.permute.xlu0 %318
      %322 = vset.pattern.permute.xlu0 0
      %323 = vperm.xlu0 %322, %v305
      %v324 = vpop.permute.xlu0 %323
      %vm326 = vcmask 15360
      %v328 = vsel %vm326, %v298, 0
      %v331 = vsel %vm326, %v299, 0
      %v334 = vsel %vm326, %v300, 0
      %v337 = vsel %vm326, %v301, 0
      %v340 = vsel %vm326, %v282, 0
      %v343 = vsel %vm326, %v283, 0
      %v346 = vsel %vm326, %v284, 0
      %v349 = vsel %vm326, %v285, 0
      %v352 = vsel %vm326, %v286, 0
      %v355 = vsel %vm326, %v287, 0
      %v358 = vsel %vm326, %v288, 0
      %v361 = vsel %vm326, %v289, 0
      %v364 = vsel %vm326, %v290, 0
      %v367 = vsel %vm326, %v291, 0
      %v370 = vsel %vm326, %v292, 0
      %v373 = vsel %vm326, %v293, 0
      %v376 = vsel %vm326, %v294, 0
      %v379 = vsel %vm326, %v295, 0
      %v382 = vsel %vm326, %v296, 0
      %v385 = vsel %vm326, %v297, 0
      %387 = vmatprep.subr.mxu0 0.0
      %388 = vmatpush1.xpose.msra.mxu0 %v340
      %389 = vmatprep.subr.mxu0 0.0
      %390 = vmatpush1.xpose.msra.mxu0 %v343
      %391 = vmatprep.subr.mxu0 0.0
      %392 = vmatpush1.xpose.msra.mxu0 %v346
      %393 = vmatprep.subr.mxu0 0.0
      %394 = vmatpush1.xpose.msra.mxu0 %v349
      %395 = vmatprep.subr.mxu0 0.0
      %396 = vmatpush1.xpose.msra.mxu0 %v352
      %397 = vmatprep.subr.mxu0 0.0
      %398 = vmatpush1.xpose.msra.mxu0 %v355
      %399 = vmatprep.subr.mxu0 0.0
      %400 = vmatpush1.xpose.msra.mxu0 %v358
      %401 = vmatprep.subr.mxu0 0.0
      %402 = vmatpush1.xpose.msra.mxu0 %v361
      %403 = vmatprep.subr.mxu0 0.0
      %404 = vmatpush1.xpose.msra.mxu0 %v364
      %405 = vmatprep.subr.mxu0 0.0
      %406 = vmatpush1.xpose.msra.mxu0 %v367
      %407 = vmatprep.subr.mxu0 0.0
      %408 = vmatpush1.xpose.msra.mxu0 %v370
      %409 = vmatprep.subr.mxu0 0.0
      %410 = vmatpush1.xpose.msra.mxu0 %v373
      %411 = vmatprep.subr.mxu0 0.0
      %412 = vmatpush1.xpose.msra.mxu0 %v376
      %413 = vmatprep.subr.mxu0 0.0
      %414 = vmatpush1.xpose.msra.mxu0 %v379
      %415 = vmatprep.subr.mxu0 0.0
      %416 = vmatpush1.xpose.msra.mxu0 %v382
      %417 = vmatprep.subr.mxu0 0.0
      %418 = vmatpush1.xpose.msra.mxu0 %v385
      %419 = vmatprep.subr.mxu0 0.0
      %420 = vmatpush1.xpose.msra.mxu0 0.0
      %421 = vmatprep.subr.mxu0 0.0
      %422 = vmatpush1.xpose.msra.mxu0 0.0
      %423 = vmatprep.subr.mxu0 0.0
      %424 = vmatpush1.xpose.msra.mxu0 0.0
      %425 = vmatprep.subr.mxu0 0.0
      %426 = vmatpush1.xpose.msra.mxu0 0.0
      %427 = vmatprep.subr.mxu0 0.0
      %428 = vmatpush1.xpose.msra.mxu0 0.0
      %429 = vmatprep.subr.mxu0 0.0
      %430 = vmatpush1.xpose.msra.mxu0 0.0
      %431 = vmatprep.subr.mxu0 0.0
      %432 = vmatpush1.xpose.msra.mxu0 0.0
      %433 = vmatprep.subr.mxu0 0.0
      %434 = vmatpush1.xpose.msra.mxu0 0.0
      %435 = vmatprep.subr.mxu0 0.0
      %436 = vmatpush1.xpose.msra.mxu0 0.0
      %437 = vmatprep.subr.mxu0 0.0
      %438 = vmatpush1.xpose.msra.mxu0 0.0
      %439 = vmatprep.subr.mxu0 0.0
      %440 = vmatpush1.xpose.msra.mxu0 0.0
      %441 = vmatprep.subr.mxu0 0.0
      %442 = vmatpush1.xpose.msra.mxu0 0.0
      %443 = vmatprep.subr.mxu0 0.0
      %444 = vmatpush1.xpose.msra.mxu0 0.0
      %445 = vmatprep.subr.mxu0 0.0
      %446 = vmatpush1.xpose.msra.mxu0 0.0
      %447 = vmatprep.subr.mxu0 0.0
      %448 = vmatpush1.xpose.msra.mxu0 0.0
      %449 = vmatprep.subr.mxu0 0.0
      %450 = vmatpush1.xpose.msra.mxu0 0.0
      %451 = vmatprep.mubr.f32.mxu0 0.0
      %452 = vmatmul.mubr.f32.gmra.mrb[0].mxu0 %v328
      %v453 = vpop.f32.mrb[0].mxu0
      %v454 = vadd.f32 %v309, %v453
      %v455 = vpop.f32.mrb[0].mxu0
      %456 = vmatprep.mubr.f32.mxu0 0.0
      %457 = vmatmul.mubr.f32.gmra.mrb[0].mxu0 %v331
      %v458 = vpop.f32.mrb[0].mxu0
      %v459 = vadd.f32 %v314, %v458
      %v460 = vpop.f32.mrb[0].mxu0
      %461 = vmatprep.mubr.f32.mxu0 0.0
      %462 = vmatmul.mubr.f32.gmra.mrb[0].mxu0 %v334
      %v463 = vpop.f32.mrb[0].mxu0
      %v464 = vadd.f32 %v319, %v463
      %v465 = vpop.f32.mrb[0].mxu0
      %466 = vmatprep.mubr.f32.mxu0 0.0
      %467 = vmatmul.mubr.f32.gmra.mrb[0].mxu0 %v337
      %v468 = vpop.f32.mrb[0].mxu0
      %v469 = vadd.f32 %v324, %v468
      %v470 = vpop.f32.mrb[0].mxu0
      %471 = vdwg.mxu0
      %v472 = vmul.f32 %v454, %v454
      %v473 = vmul.f32 %v459, %v459
      %v474 = vmul.f32 %v464, %v464
      %v475 = vmul.f32 %v469, %v469
      %v476 = vmul.f32 %v454, %v472
      %v477 = vmul.f32 %v459, %v473
      %v478 = vmul.f32 %v464, %v474
      %v479 = vmul.f32 %v469, %v475
      %v480 = vmul.f32 %v476, 0.044715
      %v481 = vmul.f32 %v477, 0.044715
      %v482 = vmul.f32 %v478, 0.044715
      %v483 = vmul.f32 %v479, 0.044715
      %v484 = vadd.f32 %v454, %v480
      %v485 = vadd.f32 %v459, %v481
      %v486 = vadd.f32 %v464, %v482
      %v487 = vadd.f32 %v469, %v483
      %v488 = vmul.f32 %v484, 0.7978846
      %v489 = vmul.f32 %v485, 0.7978846
      %v490 = vmul.f32 %v486, 0.7978846
      %v491 = vmul.f32 %v487, 0.7978846
      %v492 = vtanh.pop %v488
      %v493 = vtanh.pop %v489
      %v494 = vtanh.pop %v490
      %v495 = vtanh.pop %v491
      %v496 = vadd.f32 %v492, 1.0
      %v497 = vadd.f32 %v493, 1.0
      %v498 = vadd.f32 %v494, 1.0
      %v499 = vadd.f32 %v495, 1.0
      %v500 = vmul.f32 %v496, 0.5
      %v501 = vmul.f32 %v497, 0.5
      %v502 = vmul.f32 %v498, 0.5
      %v503 = vmul.f32 %v499, 0.5
      %v504 = vmul.f32 %v454, %v500
      %v505 = vmul.f32 %v459, %v501
      %v506 = vmul.f32 %v464, %v502
      %v507 = vmul.f32 %v469, %v503
      %v508 = vld [vmem:[%s3] sm:$0xff]
      %v509 = vld [vmem:[%s3 + $0x8] sm:$0xff]
      %v510 = vld [vmem:[%s3 + $0x10] sm:$0xff]
      %v511 = vld [vmem:[%s3 + $0x18] sm:$0xff]
      %v512 = vld [vmem:[%s4] sm:$0xff]
      %v513 = vld [vmem:[%s4 + $0x8] sm:$0xff]
      %v514 = vld [vmem:[%s4 + $0x10] sm:$0xff]
      %v515 = vld [vmem:[%s4 + $0x18] sm:$0xff]
      %517 = vset.pattern.permute.xlu0 0
      %518 = vperm.xlu0 %517, %v512
      %v519 = vpop.permute.xlu0 %518
      %522 = vset.pattern.permute.xlu0 0
      %523 = vperm.xlu0 %522, %v513
      %v524 = vpop.permute.xlu0 %523
      %527 = vset.pattern.permute.xlu0 0
      %528 = vperm.xlu0 %527, %v514
      %v529 = vpop.permute.xlu0 %528
      %532 = vset.pattern.permute.xlu0 0
      %533 = vperm.xlu0 %532, %v515
      %v534 = vpop.permute.xlu0 %533
      %vm536 = vcmask 261120
      %v538 = vsel %vm536, %v508, 0
      %v541 = vsel %vm536, %v509, 0
      %v544 = vsel %vm536, %v510, 0
      %v547 = vsel %vm536, %v511, 0
      %549 = vmatprep.subr.mxu0 0.0
      %550 = vmatpush1.msra.mxu0 %v504
      %551 = vmatprep.subr.mxu0 0.0
      %552 = vmatpush1.msra.mxu0 %v505
      %553 = vmatprep.subr.mxu0 0.0
      %554 = vmatpush1.msra.mxu0 %v506
      %555 = vmatprep.subr.mxu0 0.0
      %556 = vmatpush1.msra.mxu0 %v507
      %557 = vmatprep.subr.mxu0 0.0
      %558 = vmatpush1.msra.mxu0 0.0
      %559 = vmatprep.subr.mxu0 0.0
      %560 = vmatpush1.msra.mxu0 0.0
      %561 = vmatprep.subr.mxu0 0.0
      %562 = vmatpush1.msra.mxu0 0.0
      %563 = vmatprep.subr.mxu0 0.0
      %564 = vmatpush1.msra.mxu0 0.0
      %565 = vmatprep.subr.mxu0 0.0
      %566 = vmatpush1.msra.mxu0 0.0
      %567 = vmatprep.subr.mxu0 0.0
      %568 = vmatpush1.msra.mxu0 0.0
      %569 = vmatprep.subr.mxu0 0.0
      %570 = vmatpush1.msra.mxu0 0.0
      %571 = vmatprep.subr.mxu0 0.0
      %572 = vmatpush1.msra.mxu0 0.0
      %573 = vmatprep.subr.mxu0 0.0
      %574 = vmatpush1.msra.mxu0 0.0
      %575 = vmatprep.subr.mxu0 0.0
      %576 = vmatpush1.msra.mxu0 0.0
      %577 = vmatprep.subr.mxu0 0.0
      %578 = vmatpush1.msra.mxu0 0.0
      %579 = vmatprep.subr.mxu0 0.0
      %580 = vmatpush1.msra.mxu0 0.0
      %581 = vmatprep.subr.mxu0 0.0
      %582 = vmatpush1.msra.mxu0 0.0
      %583 = vmatprep.subr.mxu0 0.0
      %584 = vmatpush1.msra.mxu0 0.0
      %585 = vmatprep.subr.mxu0 0.0
      %586 = vmatpush1.msra.mxu0 0.0
      %587 = vmatprep.subr.mxu0 0.0
      %588 = vmatpush1.msra.mxu0 0.0
      %589 = vmatprep.subr.mxu0 0.0
      %590 = vmatpush1.msra.mxu0 0.0
      %591 = vmatprep.subr.mxu0 0.0
      %592 = vmatpush1.msra.mxu0 0.0
      %593 = vmatprep.subr.mxu0 0.0
      %594 = vmatpush1.msra.mxu0 0.0
      %595 = vmatprep.subr.mxu0 0.0
      %596 = vmatpush1.msra.mxu0 0.0
      %597 = vmatprep.subr.mxu0 0.0
      %598 = vmatpush1.msra.mxu0 0.0
      %599 = vmatprep.subr.mxu0 0.0
      %600 = vmatpush1.msra.mxu0 0.0
      %601 = vmatprep.subr.mxu0 0.0
      %602 = vmatpush1.msra.mxu0 0.0
      %603 = vmatprep.subr.mxu0 0.0
      %604 = vmatpush1.msra.mxu0 0.0
      %605 = vmatprep.subr.mxu0 0.0
      %606 = vmatpush1.msra.mxu0 0.0
      %607 = vmatprep.subr.mxu0 0.0
      %608 = vmatpush1.msra.mxu0 0.0
      %609 = vmatprep.subr.mxu0 0.0
      %610 = vmatpush1.msra.mxu0 0.0
      %611 = vmatprep.subr.mxu0 0.0
      %612 = vmatpush1.msra.mxu0 0.0
      %613 = vmatprep.mubr.f32.mxu0 0.0
      %614 = vmatmul.mubr.f32.gmra.mrb[0].mxu0 %v538
      %v615 = vpop.f32.mrb[0].mxu0
      %v616 = vadd.f32 %v519, %v615
      %v617 = vpop.f32.mrb[0].mxu0
      %618 = vmatprep.mubr.f32.mxu0 0.0
      %619 = vmatmul.mubr.f32.gmra.mrb[0].mxu0 %v541
      %v620 = vpop.f32.mrb[0].mxu0
      %v621 = vadd.f32 %v524, %v620
      %v622 = vpop.f32.mrb[0].mxu0
      %623 = vmatprep.mubr.f32.mxu0 0.0
      %624 = vmatmul.mubr.f32.gmra.mrb[0].mxu0 %v544
      %v625 = vpop.f32.mrb[0].mxu0
      %v626 = vadd.f32 %v529, %v625
      %v627 = vpop.f32.mrb[0].mxu0
      %628 = vmatprep.mubr.f32.mxu0 0.0
      %629 = vmatmul.mubr.f32.gmra.mrb[0].mxu0 %v547
      %v630 = vpop.f32.mrb[0].mxu0
      %v631 = vadd.f32 %v534, %v630
      %v632 = vpop.f32.mrb[0].mxu0
      %633 = vdwg.mxu0
      %v634 = vmul.f32 %v616, %v616
      %v635 = vmul.f32 %v621, %v621
      %v636 = vmul.f32 %v626, %v626
      %v637 = vmul.f32 %v631, %v631
      %v638 = vmul.f32 %v616, %v634
      %v639 = vmul.f32 %v621, %v635
      %v640 = vmul.f32 %v626, %v636
      %v641 = vmul.f32 %v631, %v637
      %v642 = vmul.f32 %v638, 0.044715
      %v643 = vmul.f32 %v639, 0.044715
      %v644 = vmul.f32 %v640, 0.044715
      %v645 = vmul.f32 %v641, 0.044715
      %v646 = vadd.f32 %v616, %v642
      %v647 = vadd.f32 %v621, %v643
      %v648 = vadd.f32 %v626, %v644
      %v649 = vadd.f32 %v631, %v645
      %v650 = vmul.f32 %v646, 0.7978846
      %v651 = vmul.f32 %v647, 0.7978846
      %v652 = vmul.f32 %v648, 0.7978846
      %v653 = vmul.f32 %v649, 0.7978846
      %v654 = vtanh.pop %v650
      %v655 = vtanh.pop %v651
      %v656 = vtanh.pop %v652
      %v657 = vtanh.pop %v653
      %v658 = vadd.f32 %v654, 1.0
      %v659 = vadd.f32 %v655, 1.0
      %v660 = vadd.f32 %v656, 1.0
      %v661 = vadd.f32 %v657, 1.0
      %v662 = vmul.f32 %v658, 0.5
      %v663 = vmul.f32 %v659, 0.5
      %v664 = vmul.f32 %v660, 0.5
      %v665 = vmul.f32 %v661, 0.5
      %v666 = vmul.f32 %v616, %v662
      %v667 = vmul.f32 %v621, %v663
      %v668 = vmul.f32 %v626, %v664
      %v669 = vmul.f32 %v631, %v665
      %v670 = vld [vmem:[%s5] sm:$0x7]
      %v671 = vld [vmem:[%s6] sm:$0x7]
      %673 = vset.pattern.permute.xlu0 0
      %674 = vperm.xlu0 %673, %v671
      %v675 = vpop.permute.xlu0 %674
      %v678 = vsel %vm536, %v670, 0
      %680 = vmatprep.subr.mxu0 0.0
      %681 = vmatpush1.msra.mxu0 %v666
      %682 = vmatprep.subr.mxu0 0.0
      %683 = vmatpush1.msra.mxu0 %v667
      %684 = vmatprep.subr.mxu0 0.0
      %685 = vmatpush1.msra.mxu0 %v668
      %686 = vmatprep.subr.mxu0 0.0
      %687 = vmatpush1.msra.mxu0 %v669
      %688 = vmatprep.subr.mxu0 0.0
      %689 = vmatpush1.msra.mxu0 0.0
      %690 = vmatprep.subr.mxu0 0.0
      %691 = vmatpush1.msra.mxu0 0.0
      %692 = vmatprep.subr.mxu0 0.0
      %693 = vmatpush1.msra.mxu0 0.0
      %694 = vmatprep.subr.mxu0 0.0
      %695 = vmatpush1.msra.mxu0 0.0
      %696 = vmatprep.subr.mxu0 0.0
      %697 = vmatpush1.msra.mxu0 0.0
      %698 = vmatprep.subr.mxu0 0.0
      %699 = vmatpush1.msra.mxu0 0.0
      %700 = vmatprep.subr.mxu0 0.0
      %701 = vmatpush1.msra.mxu0 0.0
      %702 = vmatprep.subr.mxu0 0.0
      %703 = vmatpush1.msra.mxu0 0.0
      %704 = vmatprep.subr.mxu0 0.0
      %705 = vmatpush1.msra.mxu0 0.0
      %706 = vmatprep.subr.mxu0 0.0
      %707 = vmatpush1.msra.mxu0 0.0
      %708 = vmatprep.subr.mxu0 0.0
      %709 = vmatpush1.msra.mxu0 0.0
      %710 = vmatprep.subr.mxu0 0.0
      %711 = vmatpush1.msra.mxu0 0.0
      %712 = vmatprep.subr.mxu0 0.0
      %713 = vmatpush1.msra.mxu0 0.0
      %714 = vmatprep.subr.mxu0 0.0
      %715 = vmatpush1.msra.mxu0 0.0
      %716 = vmatprep.subr.mxu0 0.0
      %717 = vmatpush1.msra.mxu0 0.0
      %718 = vmatprep.subr.mxu0 0.0
      %719 = vmatpush1.msra.mxu0 0.0
      %720 = vmatprep.subr.mxu0 0.0
      %721 = vmatpush1.msra.mxu0 0.0
      %722 = vmatprep.subr.mxu0 0.0
      %723 = vmatpush1.msra.mxu0 0.0
      %724 = vmatprep.subr.mxu0 0.0
      %725 = vmatpush1.msra.mxu0 0.0
      %726 = vmatprep.subr.mxu0 0.0
      %727 = vmatpush1.msra.mxu0 0.0
      %728 = vmatprep.subr.mxu0 0.0
      %729 = vmatpush1.msra.mxu0 0.0
      %730 = vmatprep.subr.mxu0 0.0
      %731 = vmatpush1.msra.mxu0 0.0
      %732 = vmatprep.subr.mxu0 0.0
      %733 = vmatpush1.msra.mxu0 0.0
      %734 = vmatprep.subr.mxu0 0.0
      %735 = vmatpush1.msra.mxu0 0.0
      %736 = vmatprep.subr.mxu0 0.0
      %737 = vmatpush1.msra.mxu0 0.0
      %738 = vmatprep.subr.mxu0 0.0
      %739 = vmatpush1.msra.mxu0 0.0
      %740 = vmatprep.subr.mxu0 0.0
      %741 = vmatpush1.msra.mxu0 0.0
      %742 = vmatprep.subr.mxu0 0.0
      %743 = vmatpush1.msra.mxu0 0.0
      %744 = vmatprep.mubr.f32.mxu0 0.0
      %745 = vmatmul.mubr.f32.gmra.mrb[0].mxu0 %v678
      %v746 = vpop.f32.mrb[0].mxu0
      %v747 = vadd.f32 %v675, %v746
      %v748 = vpop.f32.mrb[0].mxu0
      %749 = vdwg.mxu0
      %750 = vxpose.xlu0.b32.start [1/16] %v747, 128
      %751 = vxpose.xlu0.b32.cont [2/16] 0.0, 128
      %752 = vxpose.xlu0.b32.cont [3/16] 0.0, 128
      %753 = vxpose.xlu0.b32.cont [4/16] 0.0, 128
      %754 = vxpose.xlu0.b32.cont [5/16] 0.0, 128
      %755 = vxpose.xlu0.b32.cont [6/16] 0.0, 128
      %756 = vxpose.xlu0.b32.cont [7/16] 0.0, 128
      %757 = vxpose.xlu0.b32.cont [8/16] 0.0, 128
      %758 = vxpose.xlu0.b32.cont [9/16] 0.0, 128
      %759 = vxpose.xlu0.b32.cont [10/16] 0.0, 128
      %760 = vxpose.xlu0.b32.cont [11/16] 0.0, 128
      %761 = vxpose.xlu0.b32.cont [12/16] 0.0, 128
      %762 = vxpose.xlu0.b32.cont [13/16] 0.0, 128
      %763 = vxpose.xlu0.b32.cont [14/16] 0.0, 128
      %764 = vxpose.xlu0.b32.cont [15/16] 0.0, 128
      %765 = vxpose.xlu0.b32.end [16/16] 0.0, 128
      %v766 = vpop.trf.xlu0
      %v767 = vpop.trf.xlu0
      %v768 = vpop.trf.xlu0
      %v769 = vpop.trf.xlu0
      %v770 = vpop.trf.xlu0
      %v771 = vpop.trf.xlu0
      %v772 = vpop.trf.xlu0
      %v773 = vpop.trf.xlu0
      %v774 = vpop.trf.xlu0
      %v775 = vpop.trf.xlu0
      %v776 = vpop.trf.xlu0
      %v777 = vpop.trf.xlu0
      %v778 = vpop.trf.xlu0
      %v779 = vpop.trf.xlu0
      %v780 = vpop.trf.xlu0
      %v781 = vpop.trf.xlu0
      %vm782 = vcmask 23552
      %783 = vst.msk [vmem:[%s280] sm:$0xff] %vm782, %v766
      %784 = vst.msk [vmem:[%s280 + $0x8] sm:$0xff] %vm782, %v767
      %785 = vst.msk [vmem:[%s280 + $0x10] sm:$0xff] %vm782, %v768
      %786 = vst.msk [vmem:[%s280 + $0x18] sm:$0xff] %vm782, %v769
      %787 = vst.msk [vmem:[%s280 + $0x20] sm:$0xff] %vm782, %v770
      %788 = vst.msk [vmem:[%s280 + $0x28] sm:$0xff] %vm782, %v771
      %789 = vst.msk [vmem:[%s280 + $0x30] sm:$0xff] %vm782, %v772
      %790 = vst.msk [vmem:[%s280 + $0x38] sm:$0xff] %vm782, %v773
      %791 = vst.msk [vmem:[%s280 + $0x40] sm:$0xff] %vm782, %v774
      %792 = vst.msk [vmem:[%s280 + $0x48] sm:$0xff] %vm782, %v775
      %793 = vst.msk [vmem:[%s280 + $0x50] sm:$0xff] %vm782, %v776
      %794 = vst.msk [vmem:[%s280 + $0x58] sm:$0xff] %vm782, %v777
      %795 = vst.msk [vmem:[%s280 + $0x60] sm:$0xff] %vm782, %v778
      %796 = vst.msk [vmem:[%s280 + $0x68] sm:$0xff] %vm782, %v779
      %797 = vst.msk [vmem:[%s280 + $0x70] sm:$0xff] %vm782, %v780
      %798 = vst.msk [vmem:[%s280 + $0x78] sm:$0xff] %vm782, %v781
      %s799 = smul.u32 16, %s18
      %p800 = scmp.lt.s32.totalorder %s799, 31
      %s801 = scalar_select %p800, %s799, 31
      %s802 = smul.addr %s801, 8
      %s803 = scalar_lea.vmem %s7, %s802
      // Predicated region
      $region49: #{tpu_custom_call.1} parent=47 // pred_check
        %p804 = pneg %p188
      $region50: #{tpu_custom_call.1} parent=47 // pred_check_branch
        %806 = sbr.rel (%p804) target = $region52
      $region51: #{tpu_custom_call.1} parent=47 // pred_region
        %s807 = smul.u32 16, %s18
      $region52: #{tpu_custom_call.1} parent=47 // pred_fallthru
        _
    $region48: #{tpu_custom_call.1} parent=5 // pred_fallthru
      _
    %p808 = scmp.le.s32.totalorder 2, %s13
    // Predicated region
    $region53: #{tpu_custom_call.1} parent=5 // pred_check
      %p809 = pneg %p808
    $region54: #{tpu_custom_call.1} parent=5 // pred_check_branch
      %811 = sbr.rel (%p809) target = $region56
    $region55: #{tpu_custom_call.1} parent=5 // pred_region
      %s812 = ssub.s32 %s13, 2
      // Predicated region
      $region57: #{tpu_custom_call.1} parent=55 // pred_check
        %p813 = pneg %p194
      $region58: #{tpu_custom_call.1} parent=55 // pred_check_branch
        %815 = sbr.rel (%p813) target = $region60
      $region59: #{tpu_custom_call.1} parent=55 // pred_region
        %s816 = smul.u32 16, %s19
        %p817 = scmp.lt.s32.totalorder %s816, 31
        %s818 = scalar_select %p817, %s816, 31
        %s819 = smul.addr %s818, 8
        %s820 = scalar_lea.vmem %s7, %s819
      $region60: #{tpu_custom_call.1} parent=55 // pred_fallthru
        _
    $region56: #{tpu_custom_call.1} parent=5 // pred_fallthru
      _
  $region6: #{tpu_custom_call.1} parent=0 // loop_footer
    %s17 = sadd.s32 1, %s13
  $region7: #{tpu_custom_call.1} parent=0 // loop_footer_branch
    %12 = sbr.rel target = $region3
  $region8: #{tpu_custom_call.1} parent=0 // loop_exit
    _

</llo_original>
